<compile_context>
chip_gen: v6e
topology: v6e:2x2x1
jax: 0.10.0
libtpu: 0.0.40
codegen_flags: <defaults>
</compile_context>

<pallas_src>
import functools

import jax
import jax.numpy as jnp
from jax.experimental import pallas as pl
from jax.experimental.pallas import tpu as pltpu


def up_conv_kernel(x_ref, w_ref, g_ref, b_ref, o_ref, *, cin, cout, W0, S, eps, slope):
    # x_ref: (1, Cin, L) bf16 with L = (H0+2)*W0 + 2 (H-padded, flattened, 1-elem guards)
    # w_ref: (4*Cout, 9*Cin) bf16 folded upsample+conv weights
    xf = x_ref[0].astype(jnp.float32)                          # (Cin, L)

    # Output-column index j = s % W0; used to zero taps that would otherwise wrap across
    # rows of the flattened image (these positions are the W-padding zeros of the conv).
    j_id = jax.lax.broadcasted_iota(jnp.int32, (cin, S), 1) % W0
    keep_left = j_id != 0              # q == 0 tap invalid at j == 0
    keep_right = j_id != (W0 - 1)      # q == 2 tap invalid at j == W0-1

    # ---- in-VMEM im2col: 9 shifted slices of the flat input -> (9*Cin, S) ----
    pieces = []
    for p in range(3):
        for q in range(3):
            off = p * W0 + q                                   # flat shift of tap (p, q)
            sl = xf[:, off:off + S]                            # (Cin, S)
            if q == 0:
                sl = jnp.where(keep_left, sl, 0.0)
            elif q == 2:
                sl = jnp.where(keep_right, sl, 0.0)
            pieces.append(sl)
    # values were bf16 in HBM, so this down-cast is exact
    rhs = jnp.concatenate(pieces, axis=0).astype(jnp.bfloat16)  # (9*Cin, S)

    # ---- upsample+conv as ONE bf16 MXU matmul, f32 accumulation ----
    y = jnp.dot(w_ref[...], rhs, preferred_element_type=jnp.float32)   # (4*Cout, S)

    # ---- InstanceNorm2d stats over 4 sub-pixel planes x S positions (= H*W px) ----
    rs1 = jnp.sum(y, axis=1, keepdims=True)                    # (4*Cout, 1)
    rs2 = jnp.sum(y * y, axis=1, keepdims=True)
    s1 = (rs1[0:cout] + rs1[cout:2 * cout]
          + rs1[2 * cout:3 * cout] + rs1[3 * cout:4 * cout])   # (Cout, 1)
    s2 = (rs2[0:cout] + rs2[cout:2 * cout]
          + rs2[2 * cout:3 * cout] + rs2[3 * cout:4 * cout])
    inv_n = 1.0 / (4.0 * S)
    mean = s1 * inv_n
    # one-pass biased variance (well-conditioned for these activations; Welford only
    # needed if |mean| >> std)
    var = s2 * inv_n - mean * mean
    scale = g_ref[...] * jax.lax.rsqrt(var + eps)              # (Cout, 1)
    shift = b_ref[...] - mean * scale
    scale4 = jnp.concatenate([scale, scale, scale, scale], axis=0)   # (4*Cout, 1)
    shift4 = jnp.concatenate([shift, shift, shift, shift], axis=0)

    y = y * scale4 + shift4
    y = jnp.where(y > 0, y, slope * y)                         # LeakyReLU(0.01)
    o_ref[0] = y.astype(o_ref.dtype)                           # lane-dense store


def _fold_upsample_into_weights(w_oihw):
    """Fold nearest-x2 upsample into the 3x3 conv.

    Returns (4*Cout, 9*Cin): row block (a, b) holds the effective weights producing
    output pixels (2i+a, 2j+b) directly from the 3x3 neighbourhood of the zero-padded
    ORIGINAL-resolution input, so the upsampled image is never materialized.
    """
    cout, cin = w_oihw.shape[0], w_oihw.shape[1]
    w = w_oihw.astype(jnp.float32)                             # (Cout, Cin, 3, 3)
    R = jnp.array([[[1., 0., 0.], [0., 1., 1.], [0., 0., 0.]],
                   [[0., 0., 0.], [1., 1., 0.], [0., 0., 1.]]], dtype=jnp.float32)
    weff = jnp.einsum('apk,bql,oikl->abopqi', R, R, w)         # (2, 2, Cout, 3, 3, Cin)
    return weff.reshape(4 * cout, 9 * cin)


@jax.jit
def up_conv_forward(x_nchw, w_oihw, gamma, beta):
    eps, slope = 1e-5, 0.01
    N, cin, H0, W0 = x_nchw.shape
    cout = w_oihw.shape[0]
    S = H0 * W0
    L = (H0 + 2) * W0 + 2

    # bf16 HBM operands: pad H by 1 (W padding is emulated in-kernel with masks so the
    # 3x3 taps become contiguous flat shifts), flatten spatial, add 1-element guards.
    xb = x_nchw.astype(jnp.bfloat16)
    xb = jnp.pad(xb, ((0, 0), (0, 0), (1, 1), (0, 0)))
    xb = xb.reshape(N, cin, (H0 + 2) * W0)
    xb = jnp.pad(xb, ((0, 0), (0, 0), (1, 1)))                 # (N, Cin, L)

    wbig = _fold_upsample_into_weights(w_oihw).astype(jnp.bfloat16)   # (4*Cout, 9*Cin)
    g = gamma.reshape(cout, 1).astype(jnp.float32)
    b = beta.reshape(cout, 1).astype(jnp.float32)

    kernel = functools.partial(up_conv_kernel, cin=cin, cout=cout, W0=W0, S=S,
                               eps=eps, slope=slope)

    # Explicit VMEM budget: double-buffered in/out blocks + weights with headroom,
    # clamped well under v7x's 64 MiB physical VMEM.
    blk_bytes = 2 * (cin * L * 2) + 2 * (4 * cout * S * 4) + 4 * cout * 9 * cin * 2
    vmem_limit = int(min(max(6 * blk_bytes, 32 * 1024 * 1024), 56 * 1024 * 1024))

    y = pl.pallas_call(
        kernel,
        out_shape=jax.ShapeDtypeStruct((N, 4 * cout, S), jnp.float32),
        grid_spec=pltpu.PrefetchScalarGridSpec(
            num_scalar_prefetch=0,
            grid=(N,),
            in_specs=[
                pl.BlockSpec((1, cin, L), lambda n: (n, 0, 0)),
                pl.BlockSpec((4 * cout, 9 * cin), lambda n: (0, 0)),
                pl.BlockSpec((cout, 1), lambda n: (0, 0)),
                pl.BlockSpec((cout, 1), lambda n: (0, 0)),
            ],
            out_specs=pl.BlockSpec((1, 4 * cout, S), lambda n: (n, 0, 0)),
        ),
        compiler_params=pltpu.CompilerParams(
            dimension_semantics=("parallel",),
            vmem_limit_bytes=vmem_limit),
    )(xb, wbig, g, b)

    # pixel-shuffle the 4 sub-pixel planes back to NCHW: out[n, o, 2i+a, 2j+b]
    # (one fused XLA transpose copy)
    y = y.reshape(N, 2, 2, cout, H0, W0)                       # (N, a, b, Cout, i, j)
    y = jnp.transpose(y, (0, 3, 4, 1, 5, 2))                   # (N, Cout, i, a, j, b)
    return y.reshape(N, cout, 2 * H0, 2 * W0)


def up_conv_reference(x_nchw, w_oihw, gamma, beta, *, eps=1e-5, slope=0.01):
    # Pure-JAX f32 reference mirroring the PyTorch module.
    x = jnp.repeat(jnp.repeat(x_nchw, 2, axis=2), 2, axis=3)
    y = jax.lax.conv_general_dilated(
        x, w_oihw, window_strides=(1, 1), padding=((1, 1), (1, 1)),
        dimension_numbers=("NCHW", "OIHW", "NCHW"))
    mean = jnp.mean(y, axis=(2, 3), keepdims=True)
    var = jnp.mean((y - mean) ** 2, axis=(2, 3), keepdims=True)
    y = (y - mean) / jnp.sqrt(var + eps)
    y = y * gamma.reshape(1, -1, 1, 1) + beta.reshape(1, -1, 1, 1)
    return jnp.where(y > 0, y, slope * y)


if __name__ == "__main__":
    N, CH_IN, CH_OUT, H0, W0 = 2, 4, 8, 16, 16

    key = jax.random.PRNGKey(0)
    kx, kw, kg, kb = jax.random.split(key, 4)
    x = jax.random.normal(kx, (N, CH_IN, H0, W0), dtype=jnp.float32)
    # Conv2d weight (no bias): PyTorch layout (Cout, Cin, 3, 3)
    w = jax.random.normal(kw, (CH_OUT, CH_IN, 3, 3), dtype=jnp.float32) * 0.1
    # InstanceNorm2d affine params (deterministic synthetic init)
    gamma = 1.0 + 0.1 * jax.random.normal(kg, (CH_OUT,), dtype=jnp.float32)
    beta = 0.1 * jax.random.normal(kb, (CH_OUT,), dtype=jnp.float32)

    out = up_conv_forward(x, w, gamma, beta)
    out = jax.block_until_ready(out)

    ref = jax.block_until_ready(up_conv_reference(x, w, gamma, beta))
    assert out.shape == (N, CH_OUT, 2 * H0, 2 * W0), out.shape
    # tolerance reflects bf16 input/weight rounding on the MXU (f32 accumulation)
    assert jnp.allclose(out, ref, atol=3e-2, rtol=3e-2), float(jnp.max(jnp.abs(out - ref)))

    print("KERNEL_OK")
</pallas_src>

<mosaic_0001>
module attributes {stable_mosaic.version = 11 : i64} {
  func.func @up_conv_kernel(%arg0: i32, %arg1: memref<1x4x290xbf16, #tpu.memory_space<vmem>>, %arg2: memref<32x36xbf16, #tpu.memory_space<vmem>>, %arg3: memref<8x1xf32, #tpu.memory_space<vmem>>, %arg4: memref<8x1xf32, #tpu.memory_space<vmem>>, %arg5: memref<1x32x256xf32, #tpu.memory_space<vmem>>) attributes {dimension_semantics = [#tpu.dimension_semantics<parallel>], iteration_bounds = array<i64: 2>, scalar_prefetch = 0 : i64, scratch_operands = 0 : i64, tpu.core_type = #tpu.core_type<tc>, window_params = [{transform_indices = @transform_0, window_bounds = array<i64: 1, 4, 290>}, {pipeline_mode = #tpu.pipeline_mode<synchronous>, transform_indices = @transform_1, window_bounds = array<i64: 32, 36>}, {pipeline_mode = #tpu.pipeline_mode<synchronous>, transform_indices = @transform_2, window_bounds = array<i64: 8, 1>}, {pipeline_mode = #tpu.pipeline_mode<synchronous>, transform_indices = @transform_3, window_bounds = array<i64: 8, 1>}, {transform_indices = @transform_4, window_bounds = array<i64: 1, 32, 256>}]} {
    %c0 = arith.constant 0 : index
    %c0_0 = arith.constant 0 : index
    %c0_1 = arith.constant 0 : index
    %0 = vector.load %arg1[%c0, %c0_0, %c0_1] : memref<1x4x290xbf16, #tpu.memory_space<vmem>>, vector<1x4x290xbf16>
    %1 = vector.shape_cast %0 : vector<1x4x290xbf16> to vector<4x290xbf16>
    %2 = arith.extf %1 : vector<4x290xbf16> to vector<4x290xf32>
    %3 = tpu.iota {dimensions = array<i32: 1>} : vector<4x256xi32>
    %c16_i32 = arith.constant 16 : i32
    %c0_i32 = arith.constant 0 : i32
    %4 = arith.cmpi eq, %c16_i32, %c0_i32 : i32
    %c1_i32 = arith.constant 1 : i32
    %5 = arith.select %4, %c1_i32, %c16_i32 : i32
    %6 = vector.broadcast %5 : i32 to vector<4x256xi32>
    %7 = arith.remsi %3, %6 : vector<4x256xi32>
    %c0_i32_2 = arith.constant 0 : i32
    %8 = vector.broadcast %c0_i32_2 : i32 to vector<4x256xi32>
    %9 = arith.cmpi ne, %7, %8 : vector<4x256xi32>
    %c0_i32_3 = arith.constant 0 : i32
    %10 = vector.broadcast %c0_i32_3 : i32 to vector<4x256xi32>
    %11 = arith.cmpi slt, %7, %10 : vector<4x256xi32>
    %c0_i32_4 = arith.constant 0 : i32
    %12 = arith.cmpi slt, %5, %c0_i32_4 : i32
    %13 = vector.broadcast %12 : i1 to vector<4x256xi1>
    %14 = vector.broadcast %13 : vector<4x256xi1> to vector<4x256xi1>
    %15 = arith.xori %11, %14 : vector<4x256xi1>
    %16 = arith.andi %15, %9 : vector<4x256xi1>
    %17 = vector.broadcast %5 : i32 to vector<4x256xi32>
    %18 = arith.addi %7, %17 : vector<4x256xi32>
    %19 = arith.select %16, %18, %7 : vector<4x256xi1>, vector<4x256xi32>
    %c0_i32_5 = arith.constant 0 : i32
    %20 = vector.broadcast %c0_i32_5 : i32 to vector<4x256xi32>
    %21 = arith.cmpi ne, %19, %20 : vector<4x256xi32>
    %c15_i32 = arith.constant 15 : i32
    %22 = vector.broadcast %c15_i32 : i32 to vector<4x256xi32>
    %23 = arith.cmpi ne, %19, %22 : vector<4x256xi32>
    %24 = vector.extract_strided_slice %2 {offsets = [0, 0], sizes = [4, 256], strides = [1, 1]} : vector<4x290xf32> to vector<4x256xf32>
    %cst = arith.constant 0.000000e+00 : f32
    %25 = vector.broadcast %cst : f32 to vector<4x256xf32>
    %26 = arith.select %21, %24, %25 : vector<4x256xi1>, vector<4x256xf32>
    %27 = vector.extract_strided_slice %2 {offsets = [0, 1], sizes = [4, 256], strides = [1, 1]} : vector<4x290xf32> to vector<4x256xf32>
    %28 = vector.extract_strided_slice %2 {offsets = [0, 2], sizes = [4, 256], strides = [1, 1]} : vector<4x290xf32> to vector<4x256xf32>
    %cst_6 = arith.constant 0.000000e+00 : f32
    %29 = vector.broadcast %cst_6 : f32 to vector<4x256xf32>
    %30 = arith.select %23, %28, %29 : vector<4x256xi1>, vector<4x256xf32>
    %31 = vector.extract_strided_slice %2 {offsets = [0, 16], sizes = [4, 256], strides = [1, 1]} : vector<4x290xf32> to vector<4x256xf32>
    %cst_7 = arith.constant 0.000000e+00 : f32
    %32 = vector.broadcast %cst_7 : f32 to vector<4x256xf32>
    %33 = arith.select %21, %31, %32 : vector<4x256xi1>, vector<4x256xf32>
    %34 = vector.extract_strided_slice %2 {offsets = [0, 17], sizes = [4, 256], strides = [1, 1]} : vector<4x290xf32> to vector<4x256xf32>
    %35 = vector.extract_strided_slice %2 {offsets = [0, 18], sizes = [4, 256], strides = [1, 1]} : vector<4x290xf32> to vector<4x256xf32>
    %cst_8 = arith.constant 0.000000e+00 : f32
    %36 = vector.broadcast %cst_8 : f32 to vector<4x256xf32>
    %37 = arith.select %23, %35, %36 : vector<4x256xi1>, vector<4x256xf32>
    %38 = vector.extract_strided_slice %2 {offsets = [0, 32], sizes = [4, 256], strides = [1, 1]} : vector<4x290xf32> to vector<4x256xf32>
    %cst_9 = arith.constant 0.000000e+00 : f32
    %39 = vector.broadcast %cst_9 : f32 to vector<4x256xf32>
    %40 = arith.select %21, %38, %39 : vector<4x256xi1>, vector<4x256xf32>
    %41 = vector.extract_strided_slice %2 {offsets = [0, 33], sizes = [4, 256], strides = [1, 1]} : vector<4x290xf32> to vector<4x256xf32>
    %42 = vector.extract_strided_slice %2 {offsets = [0, 34], sizes = [4, 256], strides = [1, 1]} : vector<4x290xf32> to vector<4x256xf32>
    %cst_10 = arith.constant 0.000000e+00 : f32
    %43 = vector.broadcast %cst_10 : f32 to vector<4x256xf32>
    %44 = arith.select %23, %42, %43 : vector<4x256xi1>, vector<4x256xf32>
    %45 = tpu.concatenate %26, %27, %30, %33, %34, %37, %40, %41, %44 in 0 : vector<4x256xf32>, vector<4x256xf32>, vector<4x256xf32>, vector<4x256xf32>, vector<4x256xf32>, vector<4x256xf32>, vector<4x256xf32>, vector<4x256xf32>, vector<4x256xf32> -> vector<36x256xf32>
    %46 = arith.truncf %45 : vector<36x256xf32> to vector<36x256xbf16>
    %c0_11 = arith.constant 0 : index
    %c0_12 = arith.constant 0 : index
    %47 = vector.load %arg2[%c0_11, %c0_12] : memref<32x36xbf16, #tpu.memory_space<vmem>>, vector<32x36xbf16>
    %cst_13 = arith.constant dense<0.000000e+00> : vector<32x256xf32>
    %48 = tpu.matmul %47, %46, %cst_13 {dimension_numbers = #tpu.dot_dimension_numbers<[1], [0], [0], [1], [0, 0, 1, 1], [], []>} : vector<32x36xbf16>, vector<36x256xbf16>, vector<32x256xf32> -> vector<32x256xf32>
    %cst_14 = arith.constant dense<0.000000e+00> : vector<32xf32>
    %49 = vector.multi_reduction <add>, %48, %cst_14 [1] : vector<32x256xf32> to vector<32xf32>
    %50 = vector.shape_cast %49 : vector<32xf32> to vector<32x1xf32>
    %51 = arith.mulf %48, %48 : vector<32x256xf32>
    %cst_15 = arith.constant dense<0.000000e+00> : vector<32xf32>
    %52 = vector.multi_reduction <add>, %51, %cst_15 [1] : vector<32x256xf32> to vector<32xf32>
    %53 = vector.shape_cast %52 : vector<32xf32> to vector<32x1xf32>
    %54 = vector.extract_strided_slice %50 {offsets = [0, 0], sizes = [8, 1], strides = [1, 1]} : vector<32x1xf32> to vector<8x1xf32>
    %55 = vector.extract_strided_slice %50 {offsets = [8, 0], sizes = [8, 1], strides = [1, 1]} : vector<32x1xf32> to vector<8x1xf32>
    %56 = arith.addf %54, %55 : vector<8x1xf32>
    %57 = vector.extract_strided_slice %50 {offsets = [16, 0], sizes = [8, 1], strides = [1, 1]} : vector<32x1xf32> to vector<8x1xf32>
    %58 = arith.addf %56, %57 : vector<8x1xf32>
    %59 = vector.extract_strided_slice %50 {offsets = [24, 0], sizes = [8, 1], strides = [1, 1]} : vector<32x1xf32> to vector<8x1xf32>
    %60 = arith.addf %58, %59 : vector<8x1xf32>
    %61 = vector.extract_strided_slice %53 {offsets = [0, 0], sizes = [8, 1], strides = [1, 1]} : vector<32x1xf32> to vector<8x1xf32>
    %62 = vector.extract_strided_slice %53 {offsets = [8, 0], sizes = [8, 1], strides = [1, 1]} : vector<32x1xf32> to vector<8x1xf32>
    %63 = arith.addf %61, %62 : vector<8x1xf32>
    %64 = vector.extract_strided_slice %53 {offsets = [16, 0], sizes = [8, 1], strides = [1, 1]} : vector<32x1xf32> to vector<8x1xf32>
    %65 = arith.addf %63, %64 : vector<8x1xf32>
    %66 = vector.extract_strided_slice %53 {offsets = [24, 0], sizes = [8, 1], strides = [1, 1]} : vector<32x1xf32> to vector<8x1xf32>
    %67 = arith.addf %65, %66 : vector<8x1xf32>
    %cst_16 = arith.constant 9.765625E-4 : f32
    %68 = vector.broadcast %cst_16 : f32 to vector<8x1xf32>
    %69 = arith.mulf %60, %68 : vector<8x1xf32>
    %cst_17 = arith.constant 9.765625E-4 : f32
    %70 = vector.broadcast %cst_17 : f32 to vector<8x1xf32>
    %71 = arith.mulf %67, %70 : vector<8x1xf32>
    %72 = arith.mulf %69, %69 : vector<8x1xf32>
    %73 = arith.subf %71, %72 : vector<8x1xf32>
    %c0_18 = arith.constant 0 : index
    %c0_19 = arith.constant 0 : index
    %74 = vector.load %arg3[%c0_18, %c0_19] : memref<8x1xf32, #tpu.memory_space<vmem>>, vector<8x1xf32>
    %cst_20 = arith.constant 9.99999974E-6 : f32
    %75 = vector.broadcast %cst_20 : f32 to vector<8x1xf32>
    %76 = arith.addf %73, %75 : vector<8x1xf32>
    %77 = math.rsqrt %76 : vector<8x1xf32>
    %78 = arith.mulf %74, %77 : vector<8x1xf32>
    %c0_21 = arith.constant 0 : index
    %c0_22 = arith.constant 0 : index
    %79 = vector.load %arg4[%c0_21, %c0_22] : memref<8x1xf32, #tpu.memory_space<vmem>>, vector<8x1xf32>
    %80 = arith.mulf %69, %78 : vector<8x1xf32>
    %81 = arith.subf %79, %80 : vector<8x1xf32>
    %82 = tpu.concatenate %78, %78, %78, %78 in 0 : vector<8x1xf32>, vector<8x1xf32>, vector<8x1xf32>, vector<8x1xf32> -> vector<32x1xf32>
    %83 = tpu.concatenate %81, %81, %81, %81 in 0 : vector<8x1xf32>, vector<8x1xf32>, vector<8x1xf32>, vector<8x1xf32> -> vector<32x1xf32>
    %84 = vector.broadcast %82 : vector<32x1xf32> to vector<32x256xf32>
    %85 = arith.mulf %48, %84 : vector<32x256xf32>
    %86 = vector.broadcast %83 : vector<32x1xf32> to vector<32x256xf32>
    %87 = arith.addf %85, %86 : vector<32x256xf32>
    %cst_23 = arith.constant 0.000000e+00 : f32
    %88 = vector.broadcast %cst_23 : f32 to vector<32x256xf32>
    %89 = arith.cmpf ogt, %87, %88 : vector<32x256xf32>
    %cst_24 = arith.constant 0.00999999977 : f32
    %90 = vector.broadcast %cst_24 : f32 to vector<32x256xf32>
    %91 = arith.mulf %90, %87 : vector<32x256xf32>
    %92 = arith.select %89, %87, %91 : vector<32x256xi1>, vector<32x256xf32>
    %c0_25 = arith.constant 0 : index
    %c0_26 = arith.constant 0 : index
    %c0_27 = arith.constant 0 : index
    %93 = vector.load %arg5[%c0_25, %c0_26, %c0_27] : memref<1x32x256xf32, #tpu.memory_space<vmem>>, vector<1x32x256xf32>
    %94 = vector.shape_cast %93 : vector<1x32x256xf32> to vector<32x256xf32>
    %95 = vector.shape_cast %92 : vector<32x256xf32> to vector<1x32x256xf32>
    tpu.vector_store %arg5[%c0_25, %c0_26, %c0_27], %95 {strides = array<i32>} : memref<1x32x256xf32, #tpu.memory_space<vmem>>, vector<1x32x256xf32>,
    return
  }
  func.func @transform_0(%arg0: i32) -> (i32, i32, i32) {
    %c0_i32 = arith.constant 0 : i32
    %c0_i32_0 = arith.constant 0 : i32
    %c0_i32_1 = arith.constant 0 : i32
    return %arg0, %c0_i32, %c0_i32_0 : i32, i32, i32
  }
  func.func @transform_1(%arg0: i32) -> (i32, i32) {
    %c0_i32 = arith.constant 0 : i32
    %c0_i32_0 = arith.constant 0 : i32
    %c0_i32_1 = arith.constant 0 : i32
    return %c0_i32, %c0_i32_0 : i32, i32
  }
  func.func @transform_2(%arg0: i32) -> (i32, i32) {
    %c0_i32 = arith.constant 0 : i32
    %c0_i32_0 = arith.constant 0 : i32
    %c0_i32_1 = arith.constant 0 : i32
    return %c0_i32, %c0_i32_0 : i32, i32
  }
  func.func @transform_3(%arg0: i32) -> (i32, i32) {
    %c0_i32 = arith.constant 0 : i32
    %c0_i32_0 = arith.constant 0 : i32
    %c0_i32_1 = arith.constant 0 : i32
    return %c0_i32, %c0_i32_0 : i32, i32
  }
  func.func @transform_4(%arg0: i32) -> (i32, i32, i32) {
    %c0_i32 = arith.constant 0 : i32
    %c0_i32_0 = arith.constant 0 : i32
    %c0_i32_1 = arith.constant 0 : i32
    return %arg0, %c0_i32, %c0_i32_0 : i32, i32, i32
  }
}

</mosaic_0001>

<llo_original>
// kernel: up_conv_forward.1
$region0: #{up_conv_forward.1}
  #allocation0 [shape = 'u32[]', space=smem, size = 0x4, offset = 0x4, fixed_abs, tag = 'smem constant byte address 0x4 - core index']
  #allocation1 [shape = 'u32[144,128]{1,0:T(1,128)}', space=vmem, size = 0x12000, scoped, tag = 'internal scratch']
  %s0 = inlined_call_operand.vmem [shape: bf16[2,4,290], index: 0, kind: input, shape index: {}]
  %s1 = inlined_call_operand.vmem [shape: bf16[32,36], index: 1, kind: input, shape index: {}]
  %s2 = inlined_call_operand.vmem [shape: f32[8,1], index: 2, kind: input, shape index: {}]
  %s3 = inlined_call_operand.vmem [shape: f32[8,1], index: 3, kind: input, shape index: {}]
  %s4 = inlined_call_operand.vmem [shape: f32[2,32,256], index: 4, kind: output, shape index: {}]
  %s5 = sld [smem:[#allocation0]]
  $region49: #{up_conv_forward.1} parent=0
    _
  %s7 = ssub.s32 1, %s5
  %s8 = scalar_select 0, %s7, %s5
  loop: start=0, step=1, limit=4
  $region2: #{up_conv_forward.1} parent=0 // loop_pre_header
    _
  $region3: #{up_conv_forward.1} parent=0 // loop_header
    %s10 = sphi 0, %s14
    %p11 = scmp.ge.s32.totalorder %s10, 4
    %s20 = sphi 0, %s22
    %s23 = sphi 0, %s20
    %s24 = sphi 0, %s23
    %s40 = sphi 0, %s24
    %s44 = sphi 0, %s44
    %s46 = sphi 0, %s44
    %s47 = sphi 0, %s46
    %s61 = sphi 0, %s47
    %s65 = sphi 0, %s65
    %s67 = sphi 0, %s65
    %s68 = sphi 0, %s67
    %s82 = sphi 0, %s68
    %s86 = sphi 0, %s86
    %s88 = sphi 0, %s86
    %s89 = sphi 0, %s88
    %s103 = sphi 0, %s89
    %s109 = sphi 0, %s111
    %s112 = sphi 0, %s109
    %s113 = sphi 0, %s112
    %s129 = sphi 0, %s113
  $region4: #{up_conv_forward.1} parent=0 // loop_header_branch
    %13 = sbr.rel (%p11) target = $region8
  $region5: #{up_conv_forward.1} parent=0 // loop_body
    %s15 = ssub.s32 %s10, 1
    %s16 = ssub.s32 %s10, 2
    %s17 = sadd.s32 %s10, 1
    %s18 = ssub.s32 %s10, %s17
    %p19 = scmp.eq.s32.totalorder %s18, 0
    %s21 = sadd.s32 %s20, 1
    %s22 = scalar_select %p19, %s20, %s21
    %p25 = pneg %p19
    %p26 = scmp.eq.s32.totalorder %s10, 1
    %p27 = por %p25, %p26
    %p28 = scmp.ne.s32.totalorder %s20, %s23
    %p29 = scmp.eq.s32.totalorder %s10, 0
    %p30 = por %p28, %p29
    %p31 = scmp.ne.s32.totalorder %s20, %s23
    %p32 = scmp.eq.s32.totalorder %s15, 1
    %p33 = por %p31, %p32
    %p34 = scmp.ne.s32.totalorder %s23, %s24
    %p35 = scmp.eq.s32.totalorder %s15, 0
    %p36 = por %p34, %p35
    %p37 = scmp.ne.s32.totalorder %s23, %s24
    %p38 = scmp.eq.s32.totalorder %s16, 1
    %p39 = por %p37, %p38
    %p41 = scmp.ne.s32.totalorder %s24, %s40
    %p42 = scmp.eq.s32.totalorder %s16, 0
    %p43 = por %p41, %p42
    %s45 = sadd.s32 %s44, 1
    %p48 = scmp.eq.s32.totalorder %s10, 1
    %p49 = scmp.ne.s32.totalorder %s44, %s46
    %p50 = scmp.eq.s32.totalorder %s10, 0
    %p51 = por %p49, %p50
    %p52 = scmp.ne.s32.totalorder %s44, %s46
    %p53 = scmp.eq.s32.totalorder %s15, 1
    %p54 = por %p52, %p53
    %p55 = scmp.ne.s32.totalorder %s46, %s47
    %p56 = scmp.eq.s32.totalorder %s15, 0
    %p57 = por %p55, %p56
    %p58 = scmp.ne.s32.totalorder %s46, %s47
    %p59 = scmp.eq.s32.totalorder %s16, 1
    %p60 = por %p58, %p59
    %p62 = scmp.ne.s32.totalorder %s47, %s61
    %p63 = scmp.eq.s32.totalorder %s16, 0
    %p64 = por %p62, %p63
    %s66 = sadd.s32 %s65, 1
    %p69 = scmp.eq.s32.totalorder %s10, 1
    %p70 = scmp.ne.s32.totalorder %s65, %s67
    %p71 = scmp.eq.s32.totalorder %s10, 0
    %p72 = por %p70, %p71
    %p73 = scmp.ne.s32.totalorder %s65, %s67
    %p74 = scmp.eq.s32.totalorder %s15, 1
    %p75 = por %p73, %p74
    %p76 = scmp.ne.s32.totalorder %s67, %s68
    %p77 = scmp.eq.s32.totalorder %s15, 0
    %p78 = por %p76, %p77
    %p79 = scmp.ne.s32.totalorder %s67, %s68
    %p80 = scmp.eq.s32.totalorder %s16, 1
    %p81 = por %p79, %p80
    %p83 = scmp.ne.s32.totalorder %s68, %s82
    %p84 = scmp.eq.s32.totalorder %s16, 0
    %p85 = por %p83, %p84
    %s87 = sadd.s32 %s86, 1
    %p90 = scmp.eq.s32.totalorder %s10, 1
    %p91 = scmp.ne.s32.totalorder %s86, %s88
    %p92 = scmp.eq.s32.totalorder %s10, 0
    %p93 = por %p91, %p92
    %p94 = scmp.ne.s32.totalorder %s86, %s88
    %p95 = scmp.eq.s32.totalorder %s15, 1
    %p96 = por %p94, %p95
    %p97 = scmp.ne.s32.totalorder %s88, %s89
    %p98 = scmp.eq.s32.totalorder %s15, 0
    %p99 = por %p97, %p98
    %p100 = scmp.ne.s32.totalorder %s88, %s89
    %p101 = scmp.eq.s32.totalorder %s16, 1
    %p102 = por %p100, %p101
    %p104 = scmp.ne.s32.totalorder %s89, %s103
    %p105 = scmp.eq.s32.totalorder %s16, 0
    %p106 = por %p104, %p105
    %s107 = ssub.s32 %s10, %s17
    %p108 = scmp.eq.s32.totalorder %s107, 0
    %s110 = sadd.s32 %s109, 1
    %s111 = scalar_select %p108, %s109, %s110
    %p114 = pneg %p108
    %p115 = scmp.eq.s32.totalorder %s10, 1
    %p116 = por %p114, %p115
    %p117 = scmp.ne.s32.totalorder %s109, %s112
    %p118 = scmp.eq.s32.totalorder %s10, 0
    %p119 = por %p117, %p118
    %p120 = scmp.ne.s32.totalorder %s109, %s112
    %p121 = scmp.eq.s32.totalorder %s15, 1
    %p122 = por %p120, %p121
    %p123 = scmp.ne.s32.totalorder %s112, %s113
    %p124 = scmp.eq.s32.totalorder %s15, 0
    %p125 = por %p123, %p124
    %p126 = scmp.ne.s32.totalorder %s112, %s113
    %p127 = scmp.eq.s32.totalorder %s16, 1
    %p128 = por %p126, %p127
    %p130 = scmp.ne.s32.totalorder %s113, %s129
    %p131 = scmp.eq.s32.totalorder %s16, 0
    %p132 = por %p130, %p131
    %p133 = scmp.le.s32.totalorder 1, %s10
    %p134 = scmp.lt.s32.totalorder %s10, 3
    %p135 = pnand %p133, %p134
    %p136 = pneg %p135
    // Predicated region
    $region9: #{up_conv_forward.1} parent=5 // pred_check
      _
    $region10: #{up_conv_forward.1} parent=5 // pred_check_branch
      %138 = sbr.rel (%p135) target = $region12
    $region11: #{up_conv_forward.1} parent=5 // pred_region
      %s139 = ssub.s32 %s10, 1
      // Predicated region
      $region13: #{up_conv_forward.1} parent=11 // pred_check
        %p140 = pneg %p57
      $region14: #{up_conv_forward.1} parent=11 // pred_check_branch
        %142 = sbr.rel (%p140) target = $region16
      $region15: #{up_conv_forward.1} parent=11 // pred_region
        _
      $region16: #{up_conv_forward.1} parent=11 // pred_fallthru
        _
      // Predicated region
      $region17: #{up_conv_forward.1} parent=11 // pred_check
        %p143 = pneg %p78
      $region18: #{up_conv_forward.1} parent=11 // pred_check_branch
        %145 = sbr.rel (%p143) target = $region20
      $region19: #{up_conv_forward.1} parent=11 // pred_region
        _
      $region20: #{up_conv_forward.1} parent=11 // pred_fallthru
        _
      // Predicated region
      $region21: #{up_conv_forward.1} parent=11 // pred_check
        %p146 = pneg %p99
      $region22: #{up_conv_forward.1} parent=11 // pred_check_branch
        %148 = sbr.rel (%p146) target = $region24
      $region23: #{up_conv_forward.1} parent=11 // pred_region
        _
      $region24: #{up_conv_forward.1} parent=11 // pred_fallthru
        _
    $region12: #{up_conv_forward.1} parent=5 // pred_fallthru
      _
    %p149 = scmp.lt.s32.totalorder %s10, 2
    // Predicated region
    $region25: #{up_conv_forward.1} parent=5 // pred_check
      %p150 = pneg %p149
    $region26: #{up_conv_forward.1} parent=5 // pred_check_branch
      %152 = sbr.rel (%p150) target = $region28
    $region27: #{up_conv_forward.1} parent=5 // pred_region
      // Predicated region
      $region29: #{up_conv_forward.1} parent=27 // pred_check
        %p153 = pneg %p30
      $region30: #{up_conv_forward.1} parent=27 // pred_check_branch
        %155 = sbr.rel (%p153) target = $region32
      $region31: #{up_conv_forward.1} parent=27 // pred_region
        %p156 = scmp.lt.s32.totalorder %s10, 1
        %s157 = scalar_select %p156, %s10, 1
        %s158 = smul.addr %s157, 3
        %s159 = smul.addr %s158, 2
        %s160 = scalar_lea.vmem %s0, %s159
      $region32: #{up_conv_forward.1} parent=27 // pred_fallthru
        _
    $region28: #{up_conv_forward.1} parent=5 // pred_fallthru
      _
    %p161 = scmp.le.s32.totalorder 1, %s10
    %p162 = scmp.lt.s32.totalorder %s10, 3
    %p163 = pnand %p161, %p162
    %p164 = pneg %p163
    // Predicated region
    $region33: #{up_conv_forward.1} parent=5 // pred_check
      _
    $region34: #{up_conv_forward.1} parent=5 // pred_check_branch
      %166 = sbr.rel (%p163) target = $region36
    $region35: #{up_conv_forward.1} parent=5 // pred_region
      %s167 = ssub.s32 %s10, 1
      %p168 = scmp.lt.s32.totalorder %s15, 1
      %s169 = scalar_select %p168, %s15, 1
      %s170 = smul.addr %s169, 3
      %s171 = smul.addr %s170, 2
      %s172 = scalar_lea.vmem %s0, %s171
      %p173 = pneg %p36
      %p174 = pneg %p33
      %p175 = pneg %p57
      %p176 = pneg %p54
      %p177 = pneg %p78
      %p178 = pneg %p75
      %p179 = pneg %p99
      %p180 = pneg %p96
      %p181 = pneg %p125
      %p182 = pneg %p122
      %p183 = scmp.lt.s32.totalorder %s15, 1
      %s184 = scalar_select %p183, %s15, 1
      %s185 = smul.addr %s184, 8
      %s186 = smul.addr %s185, 8
      %s187 = scalar_lea.vmem %s4, %s186
      %p188 = scmp.lt.s32.totalorder %s15, 1
      %s189 = scalar_select %p188, %s15, 1
      %s190 = smul.addr %s189, 3
      %s191 = smul.addr %s190, 2
      %s192 = scalar_lea.vmem %s0, %s191
      %p193 = scmp.lt.s32.totalorder %s15, 1
      %s194 = scalar_select %p193, %s15, 1
      %s195 = smul.addr %s194, 8
      %s196 = smul.addr %s195, 8
      %s197 = scalar_lea.vmem %s4, %s196
      %v199 = vld [vmem:[%s192] sm:$0x3f]
      %v200 = vunpack.c.l.bf16 %v199
      %v201 = vunpack.c.h.bf16 %v199
      %v202 = vlaneseq
      %v203 = vand.u32 %v202, 127
      %v204 = vadd.s32 %v203, 128
      %vm205 = vcmp.lt.s32.totalorder %v203, 0
      %v206 = vsub.s32 0, %v203
      %v207 = vsel %vm205, %v206, %v203
      %v208 = vshrl.u32 %v207, 4
      %v209 = vand.u32 %v207, 15
      %v210 = vsub.s32 0, %v209
      %v211 = vsel %vm205, %v210, %v209
      %vm212 = vcmp.lt.s32.totalorder %v204, 0
      %v213 = vsub.s32 0, %v204
      %v214 = vsel %vm212, %v213, %v204
      %v215 = vshrl.u32 %v214, 4
      %v216 = vand.u32 %v214, 15
      %v217 = vsub.s32 0, %v216
      %v218 = vsel %vm212, %v217, %v216
      %vm219 = vcmp.ne.s32.totalorder %v211, 0
      %vm220 = vcmp.ne.s32.totalorder %v218, 0
      %vm221 = vcmp.lt.s32.totalorder %v211, 0
      %vm222 = vcmp.lt.s32.totalorder %v218, 0
      %vm223 = vmand %vm221, %vm219
      %vm224 = vmand %vm222, %vm220
      %v225 = vadd.s32 %v211, 16
      %v226 = vadd.s32 %v218, 16
      %v227 = vsel %vm223, %v225, %v211
      %v228 = vsel %vm224, %v226, %v218
      %vm229 = vcmp.ne.s32.totalorder %v227, 0
      %vm230 = vcmp.ne.s32.totalorder %v228, 0
      %vm231 = vcmp.ne.s32.totalorder %v227, 15
      %vm232 = vcmp.ne.s32.totalorder %v228, 15
      %v234 = vcombine.high %v200, %v200
      %v236 = vsel %vm229, %v200, 0.0
      %v237 = vsel %vm230, %v234, 0.0
      %239 = vrot.lane.b32.xlu0 %v200, 126
      %v240 = vpop.permute.xlu0 %239
      %241 = vrot.lane.b32.xlu0 %v234, 126
      %v242 = vpop.permute.xlu0 %241
      %243 = vrot.lane.b32.xlu0 %v201, 126
      %v244 = vpop.permute.xlu0 %243
      %vm245 = vcmask 1031168
      %v246 = vsel %vm245, %v240, %v242
      %v247 = vsel %vm245, %v242, %v244
      %v250 = vsel %vm231, %v246, 0.0
      %v251 = vsel %vm232, %v247, 0.0
      %252 = vrot.lane.b32.xlu0 %v200, 112
      %v253 = vpop.permute.xlu0 %252
      %254 = vrot.lane.b32.xlu0 %v234, 112
      %v255 = vpop.permute.xlu0 %254
      %256 = vrot.lane.b32.xlu0 %v201, 112
      %v257 = vpop.permute.xlu0 %256
      %vm258 = vcmask 916480
      %v259 = vsel %vm258, %v253, %v255
      %v260 = vsel %vm258, %v255, %v257
      %v263 = vsel %vm229, %v259, 0.0
      %v264 = vsel %vm230, %v260, 0.0
      %265 = vrot.lane.b32.xlu0 %v200, 110
      %v266 = vpop.permute.xlu0 %265
      %267 = vrot.lane.b32.xlu0 %v234, 110
      %v268 = vpop.permute.xlu0 %267
      %269 = vrot.lane.b32.xlu0 %v201, 110
      %v270 = vpop.permute.xlu0 %269
      %vm271 = vcmask 900096
      %v272 = vsel %vm271, %v266, %v268
      %v273 = vsel %vm271, %v268, %v270
      %v276 = vsel %vm231, %v272, 0.0
      %v277 = vsel %vm232, %v273, 0.0
      %278 = vrot.lane.b32.xlu0 %v200, 96
      %v279 = vpop.permute.xlu0 %278
      %280 = vrot.lane.b32.xlu0 %v234, 96
      %v281 = vpop.permute.xlu0 %280
      %282 = vrot.lane.b32.xlu0 %v201, 96
      %v283 = vpop.permute.xlu0 %282
      %vm284 = vcmask 785408
      %v285 = vsel %vm284, %v279, %v281
      %v286 = vsel %vm284, %v281, %v283
      %v289 = vsel %vm229, %v285, 0.0
      %v290 = vsel %vm230, %v286, 0.0
      %291 = vrot.lane.b32.xlu0 %v200, 94
      %v292 = vpop.permute.xlu0 %291
      %293 = vrot.lane.b32.xlu0 %v234, 94
      %v294 = vpop.permute.xlu0 %293
      %295 = vrot.lane.b32.xlu0 %v201, 94
      %v296 = vpop.permute.xlu0 %295
      %vm297 = vcmask 769024
      %v298 = vsel %vm297, %v292, %v294
      %v299 = vsel %vm297, %v294, %v296
      %v302 = vsel %vm231, %v298, 0.0
      %v303 = vsel %vm232, %v299, 0.0
      %v304 = vcombine.low %v200, %v200
      %v305 = vcombine.low %v201, %v201
      %306 = vrot.lane.b32.xlu0 %v304, 127
      %v307 = vpop.permute.xlu0 %306
      %308 = vrot.lane.b32.xlu0 %v200, 127
      %v309 = vpop.permute.xlu0 %308
      %310 = vrot.lane.b32.xlu0 %v305, 127
      %v311 = vpop.permute.xlu0 %310
      %vm312 = vcmask 1039360
      %v313 = vsel %vm312, %v307, %v309
      %v314 = vsel %vm312, %v309, %v311
      %v319 = vrot.slane %v263, 4
      %v320 = vrot.slane %v264, 4
      %323 = vrot.lane.b32.xlu0 %v200, 111
      %v324 = vpop.permute.xlu0 %323
      %325 = vrot.lane.b32.xlu0 %v234, 111
      %v326 = vpop.permute.xlu0 %325
      %327 = vrot.lane.b32.xlu0 %v201, 111
      %v328 = vpop.permute.xlu0 %327
      %vm329 = vcmask 908288
      %v330 = vsel %vm329, %v324, %v326
      %v331 = vsel %vm329, %v326, %v328
      %v336 = vrot.slane %v276, 4
      %v337 = vrot.slane %v277, 4
      %340 = vrot.lane.b32.xlu0 %v304, 95
      %v341 = vpop.permute.xlu0 %340
      %342 = vrot.lane.b32.xlu0 %v200, 95
      %v343 = vpop.permute.xlu0 %342
      %344 = vrot.lane.b32.xlu0 %v305, 95
      %v345 = vpop.permute.xlu0 %344
      %vm346 = vcmask 777216
      %v347 = vsel %vm346, %v341, %v343
      %v348 = vsel %vm346, %v343, %v345
      %vm351 = vcmask 1043456
      %v352 = vsel %vm351, %v236, %v313
      %v353 = vsel %vm351, %v237, %v314
      %v354 = vsel %vm351, %v250, %v319
      %v355 = vsel %vm351, %v251, %v320
      %v356 = vsel %vm351, %v330, %v336
      %v357 = vsel %vm351, %v331, %v337
      %v358 = vsel %vm351, %v289, %v347
      %v359 = vsel %vm351, %v290, %v348
      %v360 = vpack.c.bf16 %v354, %v352
      %v361 = vpack.c.bf16 %v355, %v353
      %v362 = vpack.c.bf16 %v358, %v356
      %v363 = vpack.c.bf16 %v359, %v357
      %v364 = vpack.c.bf16 %v302, %v302
      %v365 = vpack.c.bf16 %v303, %v303
      %v366 = vld [vmem:[%s1] sm:$0xf]
      %v367 = vld [vmem:[%s1 + $0x4] sm:$0xf]
      %v368 = vld [vmem:[%s1 + $0x8] sm:$0xf]
      %v369 = vld [vmem:[%s1 + $0xc] sm:$0xf]
      %v374 = vunpack.c.l.b16 %v366
      %v375 = vunpack.c.l.b16 %v367
      %v376 = vunpack.c.l.b16 %v368
      %v377 = vunpack.c.l.b16 %v369
      %v378 = vpack.c.b16 %v375, %v374
      %v379 = vpack.c.b16 %v377, %v376
      %vm380 = vcmask 293888
      %v382 = vsel %vm380, %v378, 0
      %v385 = vsel %vm380, %v379, 0
      %vm387 = vcmask 1041408
      %v389 = vsel %vm387, %v364, 0
      %v392 = vsel %vm387, %v365, 0
      %394 = vmatprep.subr.bf16.mxu0 0
      %395 = vmatpush1.bf16.msra.mxu0 0
      %396 = vmatprep.subr.bf16.mxu0 0
      %397 = vmatpush1.bf16.msra.mxu0 0
      %398 = vmatprep.subr.bf16.mxu0 0
      %399 = vmatpush1.bf16.msra.mxu0 0
      %400 = vmatprep.subr.bf16.mxu0 0
      %401 = vmatpush1.bf16.msra.mxu0 0
      %402 = vmatprep.subr.bf16.mxu0 0
      %403 = vmatpush1.bf16.msra.mxu0 0
      %404 = vmatprep.subr.bf16.mxu0 %v392
      %405 = vmatpush1.bf16.msra.mxu0 %v389
      %406 = vmatprep.subr.bf16.mxu0 %v363
      %407 = vmatpush1.bf16.msra.mxu0 %v362
      %408 = vmatprep.subr.bf16.mxu0 %v361
      %409 = vmatpush1.bf16.msra.mxu0 %v360
      %410 = vmatprep.subr.bf16.mxu0 0
      %411 = vmatpush2.bf16.msra.mxu0 0
      %412 = vmatprep.subr.bf16.mxu0 0
      %413 = vmatpush2.bf16.msra.mxu0 0
      %414 = vmatprep.subr.bf16.mxu0 0
      %415 = vmatpush2.bf16.msra.mxu0 0
      %416 = vmatprep.subr.bf16.mxu0 0
      %417 = vmatpush2.bf16.msra.mxu0 0
      %418 = vmatprep.subr.bf16.mxu0 0
      %419 = vmatpush2.bf16.msra.mxu0 0
      %420 = vmatprep.subr.bf16.mxu0 0
      %421 = vmatpush2.bf16.msra.mxu0 0
      %422 = vmatprep.subr.bf16.mxu0 0
      %423 = vmatpush2.bf16.msra.mxu0 0
      %424 = vmatprep.subr.bf16.mxu0 0
      %425 = vmatpush2.bf16.msra.mxu0 0
      %426 = vmatprep.mubr.bf16.mxu0 0
      %427 = vmatmul.mubr.bf16.gmra.mxu0 %v382
      %v428 = vpop.f32.mrf.mxu0
      %v429 = vadd.f32 0.0, %v428
      %v430 = vpop.f32.mrf.mxu0
      %v431 = vadd.f32 0.0, %v430
      %v432 = vpop.f32.mrf.mxu0
      %v433 = vadd.f32 0.0, %v432
      %v434 = vpop.f32.mrf.mxu0
      %v435 = vadd.f32 0.0, %v434
      %436 = vmatprep.mubr.bf16.mxu0 0
      %437 = vmatmul.mubr.bf16.gmra.mxu0 %v385
      %v438 = vpop.f32.mrf.mxu0
      %v439 = vadd.f32 0.0, %v438
      %v440 = vpop.f32.mrf.mxu0
      %v441 = vadd.f32 0.0, %v440
      %v442 = vpop.f32.mrf.mxu0
      %v443 = vadd.f32 0.0, %v442
      %v444 = vpop.f32.mrf.mxu0
      %v445 = vadd.f32 0.0, %v444
      %446 = vdwg.mxu0
      %v447 = vadd.f32 %v429, %v431
      %448 = vadd.xlane.f32.xlu0 %v447
      %v449 = vpop.xlane.xlu0 %448
      %v450 = vadd.f32 %v433, %v435
      %451 = vadd.xlane.f32.xlu0 %v450
      %v452 = vpop.xlane.xlu0 %451
      %v453 = vadd.f32 %v439, %v441
      %454 = vadd.xlane.f32.xlu0 %v453
      %v455 = vpop.xlane.xlu0 %454
      %v456 = vadd.f32 %v443, %v445
      %457 = vadd.xlane.f32.xlu0 %v456
      %v458 = vpop.xlane.xlu0 %457
      %v459 = vmul.f32 %v429, %v429
      %v460 = vmul.f32 %v431, %v431
      %v461 = vmul.f32 %v433, %v433
      %v462 = vmul.f32 %v435, %v435
      %v463 = vmul.f32 %v439, %v439
      %v464 = vmul.f32 %v441, %v441
      %v465 = vmul.f32 %v443, %v443
      %v466 = vmul.f32 %v445, %v445
      %v467 = vadd.f32 %v459, %v460
      %468 = vadd.xlane.f32.xlu0 %v467
      %v469 = vpop.xlane.xlu0 %468
      %v470 = vadd.f32 %v461, %v462
      %471 = vadd.xlane.f32.xlu0 %v470
      %v472 = vpop.xlane.xlu0 %471
      %v473 = vadd.f32 %v463, %v464
      %474 = vadd.xlane.f32.xlu0 %v473
      %v475 = vpop.xlane.xlu0 %474
      %v476 = vadd.f32 %v465, %v466
      %477 = vadd.xlane.f32.xlu0 %v476
      %v478 = vpop.xlane.xlu0 %477
      %v479 = vadd.f32 %v449, %v452
      %v480 = vadd.f32 %v479, %v455
      %v481 = vadd.f32 %v480, %v458
      %v482 = vadd.f32 %v469, %v472
      %v483 = vadd.f32 %v482, %v475
      %v484 = vadd.f32 %v483, %v478
      %v485 = vmul.f32 %v481, 0.0009765625
      %v486 = vmul.f32 %v484, 0.0009765625
      %v487 = vmul.f32 %v485, %v485
      %v488 = vsub.f32 %v486, %v487
      %v489 = vld [vmem:[%s2] sm:$0xff]
      %v490 = vadd.f32 %v488, 1e-05
      %v491 = vrsqrt.pop %v490
      %v492 = vmul.f32 %v489, %v491
      %v493 = vld [vmem:[%s3] sm:$0xff]
      %v494 = vmul.f32 %v485, %v492
      %v495 = vsub.f32 %v493, %v494
      %497 = vset.pattern.permute.xlu0 0
      %498 = vperm.xlu0 %497, %v492
      %v499 = vpop.permute.xlu0 %498
      %v501 = vmul.f32 %v429, %v499
      %v502 = vmul.f32 %v431, %v499
      %v503 = vmul.f32 %v433, %v499
      %v504 = vmul.f32 %v435, %v499
      %v505 = vmul.f32 %v439, %v499
      %v506 = vmul.f32 %v441, %v499
      %v507 = vmul.f32 %v443, %v499
      %v508 = vmul.f32 %v445, %v499
      %510 = vset.pattern.permute.xlu0 0
      %511 = vperm.xlu0 %510, %v495
      %v512 = vpop.permute.xlu0 %511
      %v514 = vadd.f32 %v501, %v512
      %v515 = vadd.f32 %v502, %v512
      %v516 = vadd.f32 %v503, %v512
      %v517 = vadd.f32 %v504, %v512
      %v518 = vadd.f32 %v505, %v512
      %v519 = vadd.f32 %v506, %v512
      %v520 = vadd.f32 %v507, %v512
      %v521 = vadd.f32 %v508, %v512
      %vm522 = vcmp.gt.f32.partialorder %v514, 0.0
      %vm523 = vcmp.gt.f32.partialorder %v515, 0.0
      %vm524 = vcmp.gt.f32.partialorder %v516, 0.0
      %vm525 = vcmp.gt.f32.partialorder %v517, 0.0
      %vm526 = vcmp.gt.f32.partialorder %v518, 0.0
      %vm527 = vcmp.gt.f32.partialorder %v519, 0.0
      %vm528 = vcmp.gt.f32.partialorder %v520, 0.0
      %vm529 = vcmp.gt.f32.partialorder %v521, 0.0
      %v530 = vmul.f32 %v514, 0.01
      %v531 = vmul.f32 %v515, 0.01
      %v532 = vmul.f32 %v516, 0.01
      %v533 = vmul.f32 %v517, 0.01
      %v534 = vmul.f32 %v518, 0.01
      %v535 = vmul.f32 %v519, 0.01
      %v536 = vmul.f32 %v520, 0.01
      %v537 = vmul.f32 %v521, 0.01
      %v538 = vsel %vm522, %v514, %v530
      %v539 = vsel %vm523, %v515, %v531
      %v540 = vsel %vm524, %v516, %v532
      %v541 = vsel %vm525, %v517, %v533
      %v542 = vsel %vm526, %v518, %v534
      %v543 = vsel %vm527, %v519, %v535
      %v544 = vsel %vm528, %v520, %v536
      %v545 = vsel %vm529, %v521, %v537
      %546 = vst [vmem:[%s197] sm:$0xff] %v538
      %547 = vst [vmem:[%s197 + $0x8] sm:$0xff] %v539
      %548 = vst [vmem:[%s197 + $0x10] sm:$0xff] %v540
      %549 = vst [vmem:[%s197 + $0x18] sm:$0xff] %v541
      %550 = vst [vmem:[%s197 + $0x20] sm:$0xff] %v542
      %551 = vst [vmem:[%s197 + $0x28] sm:$0xff] %v543
      %552 = vst [vmem:[%s197 + $0x30] sm:$0xff] %v544
      %553 = vst [vmem:[%s197 + $0x38] sm:$0xff] %v545
      %p554 = scmp.lt.s32.totalorder %s15, 1
      %s555 = scalar_select %p554, %s15, 1
      %s556 = smul.addr %s555, 8
      %s557 = smul.addr %s556, 8
      %s558 = scalar_lea.vmem %s4, %s557
      // Predicated region
      $region37: #{up_conv_forward.1} parent=35 // pred_check
        %p559 = pneg %p122
      $region38: #{up_conv_forward.1} parent=35 // pred_check_branch
        %561 = sbr.rel (%p559) target = $region40
      $region39: #{up_conv_forward.1} parent=35 // pred_region
        _
      $region40: #{up_conv_forward.1} parent=35 // pred_fallthru
        _
    $region36: #{up_conv_forward.1} parent=5 // pred_fallthru
      _
    %p562 = scmp.le.s32.totalorder 2, %s10
    // Predicated region
    $region41: #{up_conv_forward.1} parent=5 // pred_check
      %p563 = pneg %p562
    $region42: #{up_conv_forward.1} parent=5 // pred_check_branch
      %565 = sbr.rel (%p563) target = $region44
    $region43: #{up_conv_forward.1} parent=5 // pred_region
      %s566 = ssub.s32 %s10, 2
      // Predicated region
      $region45: #{up_conv_forward.1} parent=43 // pred_check
        %p567 = pneg %p128
      $region46: #{up_conv_forward.1} parent=43 // pred_check_branch
        %569 = sbr.rel (%p567) target = $region48
      $region47: #{up_conv_forward.1} parent=43 // pred_region
        %p570 = scmp.lt.s32.totalorder %s16, 1
        %s571 = scalar_select %p570, %s16, 1
        %s572 = smul.addr %s571, 8
        %s573 = smul.addr %s572, 8
        %s574 = scalar_lea.vmem %s4, %s573
      $region48: #{up_conv_forward.1} parent=43 // pred_fallthru
        _
    $region44: #{up_conv_forward.1} parent=5 // pred_fallthru
      _
  $region6: #{up_conv_forward.1} parent=0 // loop_footer
    %s14 = sadd.s32 1, %s10
  $region7: #{up_conv_forward.1} parent=0 // loop_footer_branch
    %9 = sbr.rel target = $region3
  $region8: #{up_conv_forward.1} parent=0 // loop_exit
    _

</llo_original>
